<compile_context>
chip_gen: v5e
topology: v5e:2x2
jax: 0.10.0
libtpu: 0.0.40
codegen_flags: <defaults>
</compile_context>

<pallas_src>
import math

import jax
import jax.numpy as jnp
from jax.experimental import pallas as pl
from jax.experimental.pallas import tpu as pltpu

_LANE = 128


def _ceil_div(a, b):
    return -(-a // b)


def _round_up(a, b):
    return _ceil_div(a, b) * b


# --------------------------------------------------------------------------
# Kernels
# --------------------------------------------------------------------------
def _hard_sigmoid_kernel(x_ref, o_ref):
    x = x_ref[...]
    y = jnp.clip(x + jnp.asarray(3.0, x.dtype),
                 jnp.asarray(0.0, x.dtype),
                 jnp.asarray(6.0, x.dtype)) * jnp.asarray(1.0 / 6.0, x.dtype)
    o_ref[...] = y.astype(o_ref.dtype)


def _se_gate_kernel(x_ref, g_ref, o_ref):
    # Fused SE gate: out = x * hard_sigmoid(g); g (block_rows, 1) broadcasts
    # along the lane dimension of x (block_rows, block_cols).
    g = g_ref[...]
    gate = jnp.clip(g + jnp.asarray(3.0, g.dtype),
                    jnp.asarray(0.0, g.dtype),
                    jnp.asarray(6.0, g.dtype)) * jnp.asarray(1.0 / 6.0, g.dtype)
    o_ref[...] = (x_ref[...] * gate.astype(x_ref.dtype)).astype(o_ref.dtype)


# --------------------------------------------------------------------------
# Sizing helpers
# --------------------------------------------------------------------------
def _chip_defaults():
    """Per-generation (target_block_bytes, vmem_limit_bytes)."""
    kind = ""
    try:
        kind = jax.devices()[0].device_kind.lower()
    except Exception:
        pass
    phys_vmem = None
    try:
        phys_vmem = int(pltpu.get_tpu_info().vmem_capacity_bytes)
    except Exception:
        pass

    mib = 1024 * 1024
    if "v7" in kind or "7x" in kind or (phys_vmem is not None and phys_vmem <= 64 * mib):
        # v7x: 3.2 TB/s HBM, 64 MiB physical VMEM, 2 TensorCores/chip.
        # Bigger blocks hide the ~0.35 us/step overhead; 4x6 MiB <= 44 MiB.
        return 6 * mib, 44 * mib
    if "v6" in kind:
        # v6e: 1.4 TB/s HBM; 4x4 MiB fits the 32 MiB scoped-VMEM default.
        return 4 * mib, None
    if "v5" in kind and ("lite" in kind or "5e" in kind):
        # v5e: 16 MiB scoped-VMEM default; 2 MiB blocks are ~85% of roofline
        # and 4x2 MiB stays well under the limit.
        return 2 * mib, None
    # Unknown / other generations: conservative.
    return 2 * mib, None


def _choose_cols(n, sublane):
    """Widest lane-dense column count (multiple of 128) that divides n.

    Prefers a width whose row count is also a multiple of the sublane packing
    (fully unmasked sublane traffic); returns None when 128 does not divide n
    (the zero-copy ragged fallback handles that case).
    """
    best = None
    for cols in (4096, 2048, 1024, 512, 256, 128):
        if n % cols == 0:
            rows = n // cols
            if rows % sublane == 0:
                return cols
            if best is None:
                best = cols
    return best


def _ragged_2d(shape, sublane):
    """Zero-copy 2-D collapse (rows, cols) for element counts not divisible by
    128: cols is the product of a trailing suffix of dims, chosen as wide as
    possible while keeping at least one full sublane group of rows."""
    n = math.prod(shape) if shape else 1
    for k in range(len(shape)):
        cols = math.prod(shape[k:])
        rows = n // cols
        if rows >= sublane:
            return rows, cols
    return 1, n


def _plan_blocks(rows, cols, itemsize, sublane, target_block_bytes):
    """Pick (block_rows, block_cols) targeting ~target_block_bytes per block.

    block_cols is normally the full row (lane-dense fast path, or full-extent
    ragged rows); only pathologically wide rows get tiled along lanes in
    128-multiples (partial tail masked by Pallas).  block_rows is a sublane
    multiple (or the full row count).  The result is capped so that sizeable
    inputs produce >= 2 blocks: that shards the 'parallel' grid across v7x's
    two TensorCores and lets single-core chips overlap DMA with compute.
    """
    eff_rows = min(max(rows, 1), sublane)
    if eff_rows * cols * itemsize <= target_block_bytes:
        block_cols = cols
    else:
        block_cols = max(_LANE,
                         (target_block_bytes // (eff_rows * itemsize)) // _LANE * _LANE)

    row_bytes = block_cols * itemsize
    block_rows = max(sublane, (target_block_bytes // row_bytes) // sublane * sublane)
    if block_rows >= rows:
        block_rows = rows

    if block_rows == rows and block_cols == cols and rows >= 2 * sublane:
        block_rows = min(block_rows, _round_up(_ceil_div(rows, 2), sublane))

    return block_rows, block_cols


# --------------------------------------------------------------------------
# Public wrappers
# --------------------------------------------------------------------------
def hard_sigmoid(x: jax.Array,
                 *,
                 target_block_bytes: int | None = None,
                 vmem_limit_bytes: int | None = None,
                 donate: bool = False) -> jax.Array:
    """Elementwise hard sigmoid y = clip(x + 3, 0, 6) / 6 on any-shape input."""
    orig_shape = x.shape
    dtype = x.dtype
    n = x.size
    if n == 0:
        return x
    if x.ndim == 0:
        x = x.reshape(1, 1)

    itemsize = jnp.dtype(dtype).itemsize
    packing = max(1, 4 // itemsize)      # f32 -> 1, bf16 -> 2, int8/fp8 -> 4
    sublane = 8 * packing                # native sublane packing per vreg

    chip_block, chip_vmem = _chip_defaults()
    if target_block_bytes is None:
        target_block_bytes = chip_block
    if vmem_limit_bytes is None:
        vmem_limit_bytes = chip_vmem

    cols = _choose_cols(n, sublane)
    if cols is not None:
        rows = n // cols                 # lane-dense fast path, free reshape
    else:
        # Ragged fallback: collapse trailing dims (still a free reshape); no
        # jnp.pad and no output slice, so HBM traffic stays at 1 read + 1
        # write (the old pad+slice path cost ~3x that).
        rows, cols = _ragged_2d(x.shape, sublane)
    x2d = x.reshape(rows, cols)

    block_rows, block_cols = _plan_blocks(rows, cols, itemsize, sublane,
                                          target_block_bytes)
    grid = (pl.cdiv(rows, block_rows), pl.cdiv(cols, block_cols))

    cp_kwargs = dict(dimension_semantics=("parallel", "parallel"))
    if vmem_limit_bytes is not None:
        cp_kwargs["vmem_limit_bytes"] = vmem_limit_bytes

    call_kwargs = {}
    if donate:
        # Only beneficial when the caller donates the input under jit;
        # otherwise XLA inserts a defensive copy.
        call_kwargs["input_output_aliases"] = {0: 0}

    out2d = pl.pallas_call(
        _hard_sigmoid_kernel,
        out_shape=jax.ShapeDtypeStruct((rows, cols), dtype),
        grid_spec=pl.GridSpec(
            grid=grid,
            in_specs=[pl.BlockSpec((block_rows, block_cols), lambda i, j: (i, j))],
            out_specs=pl.BlockSpec((block_rows, block_cols), lambda i, j: (i, j)),
        ),
        compiler_params=pltpu.CompilerParams(**cp_kwargs),
        cost_estimate=pl.CostEstimate(flops=4 * n, transcendentals=0,
                                      bytes_accessed=2 * n * itemsize),
        **call_kwargs,
    )(x2d)

    return out2d.reshape(orig_shape)


def se_gate(identity: jax.Array,
            se: jax.Array,
            *,
            target_block_bytes: int | None = None,
            vmem_limit_bytes: int | None = None) -> jax.Array:
    """Fused PP-LCNet SE gate: identity * hard_sigmoid(se).

    `se` is the (N, C, 1, 1) squeeze-excite logits (same leading dims as
    `identity`, trailing dims of size 1).  Fusing the gate multiply into the
    activation removes one full HBM read + write of `identity` compared with
    a standalone hard_sigmoid followed by an elementwise multiply.
    """
    if identity.ndim != se.ndim:
        raise ValueError("identity and se must have the same rank")
    k = identity.ndim
    while k > 0 and se.shape[k - 1] == 1:
        k -= 1
    if se.shape[:k] != identity.shape[:k]:
        raise ValueError(f"incompatible shapes {identity.shape} vs {se.shape}")

    rows = math.prod(identity.shape[:k])
    cols = math.prod(identity.shape[k:])
    if rows == 0 or cols == 0:
        return identity

    dtype = identity.dtype
    itemsize = jnp.dtype(dtype).itemsize
    packing = max(1, 4 // itemsize)
    sublane = 8 * packing

    chip_block, chip_vmem = _chip_defaults()
    if target_block_bytes is None:
        target_block_bytes = chip_block
    if vmem_limit_bytes is None:
        vmem_limit_bytes = chip_vmem

    x2d = identity.reshape(rows, cols)   # free collapse of contiguous dims
    g2d = se.reshape(rows, 1)

    block_rows, block_cols = _plan_blocks(rows, cols, itemsize, sublane,
                                          target_block_bytes)
    grid = (pl.cdiv(rows, block_rows), pl.cdiv(cols, block_cols))

    cp_kwargs = dict(dimension_semantics=("parallel", "parallel"))
    if vmem_limit_bytes is not None:
        cp_kwargs["vmem_limit_bytes"] = vmem_limit_bytes

    n = rows * cols
    out2d = pl.pallas_call(
        _se_gate_kernel,
        out_shape=jax.ShapeDtypeStruct((rows, cols), dtype),
        grid_spec=pl.GridSpec(
            grid=grid,
            in_specs=[
                pl.BlockSpec((block_rows, block_cols), lambda i, j: (i, j)),
                pl.BlockSpec((block_rows, 1), lambda i, j: (i, 0)),
            ],
            out_specs=pl.BlockSpec((block_rows, block_cols), lambda i, j: (i, j)),
        ),
        compiler_params=pltpu.CompilerParams(**cp_kwargs),
        cost_estimate=pl.CostEstimate(
            flops=5 * n, transcendentals=0,
            bytes_accessed=2 * n * itemsize + rows * jnp.dtype(se.dtype).itemsize),
    )(x2d, g2d)

    return out2d.reshape(identity.shape)


def hard_sigmoid_ref(x):
    return jnp.clip(x + 3.0, 0.0, 6.0) / 6.0


if __name__ == "__main__":
    key = jax.random.PRNGKey(0)
    k1, k2, k3, k4, k5 = jax.random.split(key, 5)

    # Small NCHW input consistent with the module's usage in PP-LCNet.
    x = jax.random.normal(k1, (2, 4, 16, 16), dtype=jnp.float32) * 4.0
    y = hard_sigmoid(x)
    jax.block_until_ready(y)
    assert y.shape == x.shape and y.dtype == x.dtype
    assert jnp.allclose(y, hard_sigmoid_ref(x), atol=2e-6, rtol=1e-6)

    # Ragged element count (not a multiple of 128): zero-copy trailing-dim
    # collapse, no padding and no output slice.
    x2 = jax.random.normal(k2, (3, 5, 7, 7), dtype=jnp.float32) * 4.0
    y2 = hard_sigmoid(x2)
    jax.block_until_ready(y2)
    assert y2.shape == x2.shape and y2.dtype == x2.dtype
    assert jnp.allclose(y2, hard_sigmoid_ref(x2), atol=2e-6, rtol=1e-6)

    # bf16 path (typical inference dtype; (16, 128) sublane packing).
    x3 = jax.random.normal(k3, (2, 16, 8, 8), dtype=jnp.bfloat16) * 4.0
    y3 = hard_sigmoid(x3)
    jax.block_until_ready(y3)
    assert y3.shape == x3.shape and y3.dtype == x3.dtype
    assert jnp.allclose(y3.astype(jnp.float32),
                        hard_sigmoid_ref(x3.astype(jnp.float32)),
                        atol=2e-2, rtol=2e-2)

    # Fused SE-block gate (the PP-LCNet consumer of HardSigmoid): one pass
    # over `identity` instead of hard_sigmoid + separate broadcast multiply.
    ident = jax.random.normal(k4, (2, 16, 8, 8), dtype=jnp.float32)
    se = jax.random.normal(k5, (2, 16, 1, 1), dtype=jnp.float32) * 4.0
    g = se_gate(ident, se)
    jax.block_until_ready(g)
    assert g.shape == ident.shape and g.dtype == ident.dtype
    assert jnp.allclose(g, ident * hard_sigmoid_ref(se), atol=2e-6, rtol=1e-6)

    print("KERNEL_OK")
</pallas_src>

<mosaic_0001>
module attributes {stable_mosaic.version = 11 : i64} {
  func.func @_hard_sigmoid_kernel(%arg0: i32, %arg1: i32, %arg2: memref<8x256xf32, #tpu.memory_space<vmem>>, %arg3: memref<8x256xf32, #tpu.memory_space<vmem>>) attributes {dimension_semantics = [#tpu.dimension_semantics<parallel>, #tpu.dimension_semantics<parallel>], iteration_bounds = array<i64: 1, 1>, scalar_prefetch = 0 : i64, scratch_operands = 0 : i64, tpu.core_type = #tpu.core_type<tc>, window_params = [{transform_indices = @transform_0, window_bounds = array<i64: 8, 256>}, {transform_indices = @transform_1, window_bounds = array<i64: 8, 256>}]} {
    %c0 = arith.constant 0 : index
    %c0_0 = arith.constant 0 : index
    %0 = vector.load %arg2[%c0, %c0_0] : memref<8x256xf32, #tpu.memory_space<vmem>>, vector<8x256xf32>
    %cst = arith.constant 3.000000e+00 : f32
    %1 = vector.broadcast %cst : f32 to vector<8x256xf32>
    %2 = arith.addf %0, %1 : vector<8x256xf32>
    %cst_1 = arith.constant 0.000000e+00 : f32
    %cst_2 = arith.constant 6.000000e+00 : f32
    %3 = vector.broadcast %cst_1 : f32 to vector<8x256xf32>
    %4 = arith.maximumf %3, %2 : vector<8x256xf32>
    %5 = vector.broadcast %cst_2 : f32 to vector<8x256xf32>
    %6 = arith.minimumf %5, %4 : vector<8x256xf32>
    %cst_3 = arith.constant 0.166666672 : f32
    %7 = vector.broadcast %cst_3 : f32 to vector<8x256xf32>
    %8 = arith.mulf %6, %7 : vector<8x256xf32>
    %c0_4 = arith.constant 0 : index
    %c0_5 = arith.constant 0 : index
    %9 = vector.load %arg3[%c0_4, %c0_5] : memref<8x256xf32, #tpu.memory_space<vmem>>, vector<8x256xf32>
    tpu.vector_store %arg3[%c0_4, %c0_5], %8 {strides = array<i32>} : memref<8x256xf32, #tpu.memory_space<vmem>>, vector<8x256xf32>,
    return
  }
  func.func @transform_0(%arg0: i32, %arg1: i32) -> (i32, i32) {
    %c0_i32 = arith.constant 0 : i32
    return %arg0, %arg1 : i32, i32
  }
  func.func @transform_1(%arg0: i32, %arg1: i32) -> (i32, i32) {
    %c0_i32 = arith.constant 0 : i32
    return %arg0, %arg1 : i32, i32
  }
}

</mosaic_0001>

<llo_original>
// kernel: tpu_custom_call.1
$region0: #{tpu_custom_call.1}
  #allocation0 [shape = 'u32[]', space=smem, size = 0x4, offset = 0x4, fixed_abs, tag = 'smem constant byte address 0x4 - core index']
  #allocation1 [shape = 'u32[72,128]{1,0:T(1,128)}', space=vmem, size = 0x9000, scoped, tag = 'internal scratch']
  %s0 = inlined_call_operand.hbm [shape: f32[8,256], index: 0, kind: input, shape index: {}]
  %s1 = inlined_call_operand.hbm [shape: f32[8,256], index: 1, kind: output, shape index: {}]
  %s2 = sld [smem:[#allocation0]]
  $region18: #{tpu_custom_call.1} parent=0
    _
  %s4 = ssub.s32 1, %s2
  %s5 = scalar_select 0, %s4, %s2
  $region1: #{tpu_custom_call.1} parent=0
    #allocation2 [shape = 'u8[8192]{0}', space=vmem, size = 0x2000, scoped, tag = 'input window, operand 0, single buffered']
    #allocation3 [shape = 's32[1]{0}', space=sflag, size = 0x4, scoped, tag = 'scoped memory for tpu_custom_call.1']
    #allocation4 [shape = 's32[1]{0}', space=sflag, size = 0x4, scoped, tag = 'scoped memory for tpu_custom_call.1']
    #allocation5 [shape = 'u8[8192]{0}', space=vmem, size = 0x2000, scoped, tag = 'output window, operand 0, single buffered']
    %6 = vsyncpa [#allocation3], 0
    %7 = vsyncpa [#allocation4], 0
    // Predicated region
    $region2: #{tpu_custom_call.1} parent=1 // pred_check
      _
    $region3: #{tpu_custom_call.1} parent=1 // pred_check_branch
      %9 = sbr.rel (0) target = $region5
    $region4: #{tpu_custom_call.1} parent=1 // pred_region
      %11 = vsyncadd [#allocation3], 0
      %s13 = sshll.u32 %s0, 4
      %s14 = int_to_ptr.hbm [resolvable:$true] %s13
      %s15 = sshll.u32 [#allocation2], 4
      %s16 = int_to_ptr.vmem [resolvable:$true] %s15
      %18 = dma.hbm_to_vmem [thread:$0]  %s14, 256, %s16, [#allocation3]
    $region5: #{tpu_custom_call.1} parent=1 // pred_fallthru
      _
    // Predicated region
    $region6: #{tpu_custom_call.1} parent=1 // pred_check
      _
    $region7: #{tpu_custom_call.1} parent=1 // pred_check_branch
      %20 = sbr.rel (0) target = $region9
    $region8: #{tpu_custom_call.1} parent=1 // pred_region
      %22 = dma.done [#allocation3], 256
    $region9: #{tpu_custom_call.1} parent=1 // pred_fallthru
      _
    %v23 = vld [vmem:[#allocation2] sm:$0xff]
    %v24 = vld [vmem:[#allocation2 + $0x8] sm:$0xff]
    %v25 = vadd.f32 %v23, 3.0
    %v26 = vadd.f32 %v24, 3.0
    %v27 = vmax.f32 %v25, 0.0
    %v28 = vmax.f32 %v26, 0.0
    %v29 = vmin.f32 %v27, 6.0
    %v30 = vmin.f32 %v28, 6.0
    %v31 = vmul.f32 %v29, 0.16666667
    %v32 = vmul.f32 %v30, 0.16666667
    %33 = vst [vmem:[#allocation5] sm:$0xff] %v31
    %34 = vst [vmem:[#allocation5 + $0x8] sm:$0xff] %v32
    // Predicated region
    $region10: #{tpu_custom_call.1} parent=1 // pred_check
      _
    $region11: #{tpu_custom_call.1} parent=1 // pred_check_branch
      %36 = sbr.rel (0) target = $region13
    $region12: #{tpu_custom_call.1} parent=1 // pred_region
      %38 = vsyncadd [#allocation4], 0
      %s40 = sshll.u32 [#allocation5], 4
      %s41 = int_to_ptr.vmem [resolvable:$true] %s40
      %s42 = sshll.u32 %s1, 4
      %s43 = int_to_ptr.hbm [resolvable:$true] %s42
      %45 = dma.vmem_to_hbm [thread:$0]  %s41, 256, %s43, [#allocation4]
    $region13: #{tpu_custom_call.1} parent=1 // pred_fallthru
      _
    // Predicated region
    $region14: #{tpu_custom_call.1} parent=1 // pred_check
      _
    $region15: #{tpu_custom_call.1} parent=1 // pred_check_branch
      %47 = sbr.rel (0) target = $region17
    $region16: #{tpu_custom_call.1} parent=1 // pred_region
      %49 = dma.done [#allocation4], 256
    $region17: #{tpu_custom_call.1} parent=1 // pred_fallthru
      _
    %50 = vsyncpa [#allocation3], 1
    %51 = vsyncpa [#allocation4], 1

</llo_original>
